<compile_context>
chip_gen: v7x
topology: tpu7x:2x2x1
jax: 0.10.0
libtpu: 0.0.40
codegen_flags: <defaults>
</compile_context>

<pallas_src>
import functools

import jax
import jax.numpy as jnp
import numpy as np
from jax import lax
from jax.experimental import pallas as pl
from jax.experimental.pallas import tpu as pltpu


def _grouping_kernel(pc_ref, cent_ref, feat_ref, out_ref, *,
                     radius, use_coord, normalize_coord):
    # pc_ref   : (1, N, 3)        point coordinates (original layout)
    # cent_ref : (1, 3, St)       centroid coords, channels-first (lane-dense)
    # feat_ref : (1, C, N)        features, channels-first
    # out_ref  : (1, out_c, St)   K is broadcast outside the kernel
    pc = pc_ref[0].astype(jnp.float32)        # (N, 3)
    cent = cent_ref[0].astype(jnp.float32)    # (3, St)
    feats = feat_ref[0]                       # (C, N)

    n = pc.shape[0]
    st = cent.shape[1]
    rad2 = jnp.float32(radius * radius)

    # Per-dimension point columns, sublane-oriented (N, 1); reused below.
    pcols = [pc[:, d:d + 1] for d in range(3)]

    # ---- ball query: exact same arithmetic as the reference ----
    dist2 = jnp.zeros((n, st), jnp.float32)
    for d in range(3):
        diff = pcols[d] - cent[d:d + 1, :]            # (N,1)-(1,St) -> (N,St)
        dist2 = dist2 + diff * diff

    n_iota = lax.broadcasted_iota(jnp.int32, (n, st), 0)
    # Last in-radius point index per centroid, 0 if none (reference count bug).
    idx = jnp.max(jnp.where(dist2 < rad2, n_iota, 0), axis=0, keepdims=True)  # (1,St)

    onehot = (n_iota == idx).astype(jnp.float32)       # (N, St), one 1 per column

    # ---- feature gather on the MXU, lane-dense over centroids ----
    mm_dtype = jnp.bfloat16 if feats.dtype == jnp.bfloat16 else jnp.float32
    gathered_feat = jnp.dot(feats.astype(mm_dtype), onehot.astype(mm_dtype),
                            preferred_element_type=jnp.float32)               # (C, St)

    if use_coord:
        # Coordinate gather via masked sublane reduction (reuses pcols, avoids
        # a transposed-LHS matmul); exact since onehot has a single 1/column.
        rel = jnp.concatenate(
            [jnp.sum(onehot * pcols[d], axis=0, keepdims=True) for d in range(3)],
            axis=0)                                    # (3, St)
        rel = rel - cent
        if normalize_coord:
            rel = rel / jnp.float32(radius)
        out_ref[0, 0:3, :] = rel.astype(out_ref.dtype)
        out_ref[0, 3:, :] = gathered_feat.astype(out_ref.dtype)
    else:
        out_ref[0, :, :] = gathered_feat.astype(out_ref.dtype)


def _pick_tile_s(s, n, c, out_c):
    """Largest centroid tile (multiple of 128 when possible) fitting a VMEM budget."""
    budget = 40 << 20  # stay well under v7x's 64 MiB physical VMEM

    def est(ts):
        io = (n * 128 + c * n + (3 + out_c) * ts) * 4   # per-buffer I/O tiles (pc lane-padded)
        tmp = 3 * n * ts * 4                            # dist2 / iota / onehot working slabs
        return 2 * io + tmp

    cands = [ts for ts in (1024, 512, 256, 128) if s % ts == 0] or [s]
    for ts in cands:
        if est(ts) <= budget:
            return ts, est(ts)
    return cands[-1], est(cands[-1])


def grouping_layer(point_coord, centroid_coord, features, *,
                   radius, max_num_cluster, use_coord=True, normalize_coord=True):
    """Pallas GroupingLayer.forward. Returns (B, C+3, N', K) float32."""
    # TODO(synk): the `features is None` branch (return grouped_coord only) is not wired here.
    # TODO(synk): very large N*C (features not fitting VMEM) would need an N-tiled ball query.
    b, n, _ = point_coord.shape
    s = centroid_coord.shape[1]
    c = features.shape[1]
    k = max_num_cluster
    out_c = c + 3 if use_coord else c

    pc = point_coord.astype(jnp.float32)                                     # (B, N, 3)
    cent_t = jnp.transpose(centroid_coord.astype(jnp.float32), (0, 2, 1))    # (B, 3, S)

    tile_s, vmem_est = _pick_tile_s(s, n, c, out_c)
    assert s % tile_s == 0
    n_s_tiles = s // tile_s

    kernel = functools.partial(_grouping_kernel, radius=float(radius),
                               use_coord=use_coord, normalize_coord=normalize_coord)

    cost = pl.CostEstimate(
        flops=int(2 * b * n * s * (c + 8)),
        transcendentals=0,
        bytes_accessed=int(pc.size * 4 + cent_t.size * 4
                           + features.size * features.dtype.itemsize
                           + b * out_c * s * 4))

    cp_kwargs = dict(dimension_semantics=("parallel", "parallel"))
    if vmem_est > (30 << 20):
        cp_kwargs["vmem_limit_bytes"] = int(min(vmem_est + (8 << 20), 56 << 20))

    out3 = pl.pallas_call(
        kernel,
        out_shape=jax.ShapeDtypeStruct((b, out_c, s), jnp.float32),
        grid=(b, n_s_tiles),
        in_specs=[
            pl.BlockSpec((1, n, 3), lambda i, j: (i, 0, 0)),        # points: constant over S tiles
            pl.BlockSpec((1, 3, tile_s), lambda i, j: (i, 0, j)),   # centroids: tiled over S
            pl.BlockSpec((1, c, n), lambda i, j: (i, 0, 0)),        # features: constant over S tiles
        ],
        out_specs=pl.BlockSpec((1, out_c, tile_s), lambda i, j: (i, 0, j)),
        compiler_params=pltpu.CompilerParams(**cp_kwargs),
        cost_estimate=cost,
    )(pc, cent_t, features)

    # All K cluster slots are identical by construction (reference count bug);
    # broadcast the K axis outside the kernel.
    return jnp.broadcast_to(out3[:, :, :, None], (b, out_c, s, k))


def _reference_forward(point_coord, centroid_coord, features, radius, k,
                       use_coord=True, normalize_coord=True):
    """Pure-numpy reproduction of the PyTorch module (as written)."""
    point_coord = np.asarray(point_coord, np.float32)
    centroid_coord = np.asarray(centroid_coord, np.float32)
    features = np.asarray(features, np.float32)
    b, n, _ = point_coord.shape
    s = centroid_coord.shape[1]
    c = features.shape[1]
    rad2 = np.float32(radius) ** 2

    idx = np.zeros((b, s), np.int64)
    for bi in range(b):
        for si in range(s):
            d2 = ((centroid_coord[bi, si] - point_coord[bi]) ** 2).sum(1)
            for ki, ok in enumerate(d2 < rad2):
                if ok:
                    idx[bi, si] = ki            # count never increments in reference

    out_c = c + 3 if use_coord else c
    out = np.zeros((b, out_c, s, k), np.float32)
    for bi in range(b):
        for si in range(s):
            j = idx[bi, si]
            off = 0
            if use_coord:
                gc = point_coord[bi, j] - centroid_coord[bi, si]
                if normalize_coord:
                    gc = gc / np.float32(radius)
                out[bi, :3, si, :] = gc[:, None]
                off = 3
            out[bi, off:, si, :] = features[bi, :, j][:, None]
    return out


if __name__ == "__main__":
    B, N, S, C, K = 2, 16, 8, 4, 8
    radius = 0.4

    key = jax.random.PRNGKey(0)
    k1, k2 = jax.random.split(key)
    point_coord = jax.random.uniform(k1, (B, N, 3), dtype=jnp.float32)
    centroid_coord = point_coord[:, :S, :]          # centroids = subset of points
    features = jax.random.uniform(k2, (B, C, N), dtype=jnp.float32)

    out = grouping_layer(point_coord, centroid_coord, features,
                         radius=radius, max_num_cluster=K)
    out = jax.block_until_ready(out)

    ref = _reference_forward(point_coord, centroid_coord, features, radius, K)
    assert out.shape == (B, C + 3, S, K), out.shape
    np.testing.assert_allclose(np.asarray(out), ref, rtol=1e-5, atol=1e-5)
    print("KERNEL_OK")
</pallas_src>

<mosaic_0001>
module attributes {stable_mosaic.version = 11 : i64} {
  func.func @_grouping_kernel(%arg0: i32, %arg1: i32, %arg2: memref<1x16x3xf32, #tpu.memory_space<vmem>>, %arg3: memref<1x3x8xf32, #tpu.memory_space<vmem>>, %arg4: memref<1x4x16xf32, #tpu.memory_space<vmem>>, %arg5: memref<1x7x8xf32, #tpu.memory_space<vmem>>) attributes {dimension_semantics = [#tpu.dimension_semantics<parallel>, #tpu.dimension_semantics<parallel>], iteration_bounds = array<i64: 2, 1>, scalar_prefetch = 0 : i64, scratch_operands = 0 : i64, tpu.core_type = #tpu.core_type<tc>, window_params = [{transform_indices = @transform_0, window_bounds = array<i64: 1, 16, 3>}, {transform_indices = @transform_1, window_bounds = array<i64: 1, 3, 8>}, {transform_indices = @transform_2, window_bounds = array<i64: 1, 4, 16>}, {transform_indices = @transform_3, window_bounds = array<i64: 1, 7, 8>}]} {
    %c0 = arith.constant 0 : index
    %c0_0 = arith.constant 0 : index
    %c0_1 = arith.constant 0 : index
    %0 = vector.load %arg2[%c0, %c0_0, %c0_1] : memref<1x16x3xf32, #tpu.memory_space<vmem>>, vector<1x16x3xf32>
    %1 = vector.shape_cast %0 : vector<1x16x3xf32> to vector<16x3xf32>
    %c0_2 = arith.constant 0 : index
    %c0_3 = arith.constant 0 : index
    %c0_4 = arith.constant 0 : index
    %2 = vector.load %arg3[%c0_2, %c0_3, %c0_4] : memref<1x3x8xf32, #tpu.memory_space<vmem>>, vector<1x3x8xf32>
    %3 = vector.shape_cast %2 : vector<1x3x8xf32> to vector<3x8xf32>
    %c0_5 = arith.constant 0 : index
    %c0_6 = arith.constant 0 : index
    %c0_7 = arith.constant 0 : index
    %4 = vector.load %arg4[%c0_5, %c0_6, %c0_7] : memref<1x4x16xf32, #tpu.memory_space<vmem>>, vector<1x4x16xf32>
    %5 = vector.shape_cast %4 : vector<1x4x16xf32> to vector<4x16xf32>
    %6 = vector.extract_strided_slice %1 {offsets = [0, 0], sizes = [16, 1], strides = [1, 1]} : vector<16x3xf32> to vector<16x1xf32>
    %7 = vector.extract_strided_slice %1 {offsets = [0, 1], sizes = [16, 1], strides = [1, 1]} : vector<16x3xf32> to vector<16x1xf32>
    %8 = vector.extract_strided_slice %1 {offsets = [0, 2], sizes = [16, 1], strides = [1, 1]} : vector<16x3xf32> to vector<16x1xf32>
    %cst = arith.constant 0.000000e+00 : f32
    %9 = vector.broadcast %cst : f32 to vector<16x8xf32>
    %10 = vector.extract_strided_slice %3 {offsets = [0, 0], sizes = [1, 8], strides = [1, 1]} : vector<3x8xf32> to vector<1x8xf32>
    %11 = vector.broadcast %6 : vector<16x1xf32> to vector<16x8xf32>
    %12 = vector.broadcast %10 : vector<1x8xf32> to vector<16x8xf32>
    %13 = arith.subf %11, %12 : vector<16x8xf32>
    %14 = arith.mulf %13, %13 : vector<16x8xf32>
    %15 = arith.addf %9, %14 : vector<16x8xf32>
    %16 = vector.extract_strided_slice %3 {offsets = [1, 0], sizes = [1, 8], strides = [1, 1]} : vector<3x8xf32> to vector<1x8xf32>
    %17 = vector.broadcast %7 : vector<16x1xf32> to vector<16x8xf32>
    %18 = vector.broadcast %16 : vector<1x8xf32> to vector<16x8xf32>
    %19 = arith.subf %17, %18 : vector<16x8xf32>
    %20 = arith.mulf %19, %19 : vector<16x8xf32>
    %21 = arith.addf %15, %20 : vector<16x8xf32>
    %22 = vector.extract_strided_slice %3 {offsets = [2, 0], sizes = [1, 8], strides = [1, 1]} : vector<3x8xf32> to vector<1x8xf32>
    %23 = vector.broadcast %8 : vector<16x1xf32> to vector<16x8xf32>
    %24 = vector.broadcast %22 : vector<1x8xf32> to vector<16x8xf32>
    %25 = arith.subf %23, %24 : vector<16x8xf32>
    %26 = arith.mulf %25, %25 : vector<16x8xf32>
    %27 = arith.addf %21, %26 : vector<16x8xf32>
    %28 = tpu.iota {dimensions = array<i32: 0>} : vector<16x8xi32>
    %cst_8 = arith.constant 1.600000e-01 : f32
    %29 = vector.broadcast %cst_8 : f32 to vector<16x8xf32>
    %30 = arith.cmpf olt, %27, %29 : vector<16x8xf32>
    %c0_i32 = arith.constant 0 : i32
    %31 = vector.broadcast %c0_i32 : i32 to vector<16x8xi32>
    %32 = arith.select %30, %28, %31 : vector<16x8xi1>, vector<16x8xi32>
    %cst_9 = arith.constant dense<-2147483648> : vector<8xi32>
    %33 = vector.multi_reduction <maxsi>, %32, %cst_9 [0] : vector<16x8xi32> to vector<8xi32>
    %34 = vector.shape_cast %33 : vector<8xi32> to vector<1x8xi32>
    %35 = vector.broadcast %34 : vector<1x8xi32> to vector<16x8xi32>
    %36 = arith.cmpi eq, %28, %35 : vector<16x8xi32>
    %37 = arith.extui %36 : vector<16x8xi1> to vector<16x8xi32>
    %38 = arith.sitofp %37 : vector<16x8xi32> to vector<16x8xf32>
    %cst_10 = arith.constant dense<0.000000e+00> : vector<4x8xf32>
    %39 = tpu.matmul %5, %38, %cst_10 {dimension_numbers = #tpu.dot_dimension_numbers<[1], [0], [0], [1], [0, 0, 1, 1], [], []>} : vector<4x16xf32>, vector<16x8xf32>, vector<4x8xf32> -> vector<4x8xf32>
    %40 = vector.broadcast %6 : vector<16x1xf32> to vector<16x8xf32>
    %41 = arith.mulf %38, %40 : vector<16x8xf32>
    %cst_11 = arith.constant dense<0.000000e+00> : vector<8xf32>
    %42 = vector.multi_reduction <add>, %41, %cst_11 [0] : vector<16x8xf32> to vector<8xf32>
    %43 = vector.shape_cast %42 : vector<8xf32> to vector<1x8xf32>
    %44 = vector.broadcast %7 : vector<16x1xf32> to vector<16x8xf32>
    %45 = arith.mulf %38, %44 : vector<16x8xf32>
    %cst_12 = arith.constant dense<0.000000e+00> : vector<8xf32>
    %46 = vector.multi_reduction <add>, %45, %cst_12 [0] : vector<16x8xf32> to vector<8xf32>
    %47 = vector.shape_cast %46 : vector<8xf32> to vector<1x8xf32>
    %48 = vector.broadcast %8 : vector<16x1xf32> to vector<16x8xf32>
    %49 = arith.mulf %38, %48 : vector<16x8xf32>
    %cst_13 = arith.constant dense<0.000000e+00> : vector<8xf32>
    %50 = vector.multi_reduction <add>, %49, %cst_13 [0] : vector<16x8xf32> to vector<8xf32>
    %51 = vector.shape_cast %50 : vector<8xf32> to vector<1x8xf32>
    %52 = tpu.concatenate %43, %47, %51 in 0 : vector<1x8xf32>, vector<1x8xf32>, vector<1x8xf32> -> vector<3x8xf32>
    %53 = arith.subf %52, %3 : vector<3x8xf32>
    %cst_14 = arith.constant 4.000000e-01 : f32
    %54 = vector.broadcast %cst_14 : f32 to vector<3x8xf32>
    %55 = arith.divf %53, %54 : vector<3x8xf32>
    %c0_15 = arith.constant 0 : index
    %c0_16 = arith.constant 0 : index
    %c0_17 = arith.constant 0 : index
    %56 = vector.load %arg5[%c0_15, %c0_16, %c0_17] : memref<1x7x8xf32, #tpu.memory_space<vmem>>, vector<1x3x8xf32>
    %57 = vector.shape_cast %56 : vector<1x3x8xf32> to vector<3x8xf32>
    %58 = vector.shape_cast %55 : vector<3x8xf32> to vector<1x3x8xf32>
    tpu.vector_store %arg5[%c0_15, %c0_16, %c0_17], %58 {strides = array<i32>} : memref<1x7x8xf32, #tpu.memory_space<vmem>>, vector<1x3x8xf32>,
    %c0_18 = arith.constant 0 : index
    %c3 = arith.constant 3 : index
    %c0_19 = arith.constant 0 : index
    %59 = vector.load %arg5[%c0_18, %c3, %c0_19] : memref<1x7x8xf32, #tpu.memory_space<vmem>>, vector<1x4x8xf32>
    %60 = vector.shape_cast %59 : vector<1x4x8xf32> to vector<4x8xf32>
    %61 = vector.shape_cast %39 : vector<4x8xf32> to vector<1x4x8xf32>
    tpu.vector_store %arg5[%c0_18, %c3, %c0_19], %61 {strides = array<i32>} : memref<1x7x8xf32, #tpu.memory_space<vmem>>, vector<1x4x8xf32>,
    return
  }
  func.func @transform_0(%arg0: i32, %arg1: i32) -> (i32, i32, i32) {
    %c0_i32 = arith.constant 0 : i32
    %c0_i32_0 = arith.constant 0 : i32
    %c0_i32_1 = arith.constant 0 : i32
    return %arg0, %c0_i32, %c0_i32_0 : i32, i32, i32
  }
  func.func @transform_1(%arg0: i32, %arg1: i32) -> (i32, i32, i32) {
    %c0_i32 = arith.constant 0 : i32
    %c0_i32_0 = arith.constant 0 : i32
    return %arg0, %c0_i32, %arg1 : i32, i32, i32
  }
  func.func @transform_2(%arg0: i32, %arg1: i32) -> (i32, i32, i32) {
    %c0_i32 = arith.constant 0 : i32
    %c0_i32_0 = arith.constant 0 : i32
    %c0_i32_1 = arith.constant 0 : i32
    return %arg0, %c0_i32, %c0_i32_0 : i32, i32, i32
  }
  func.func @transform_3(%arg0: i32, %arg1: i32) -> (i32, i32, i32) {
    %c0_i32 = arith.constant 0 : i32
    %c0_i32_0 = arith.constant 0 : i32
    return %arg0, %c0_i32, %arg1 : i32, i32, i32
  }
}

</mosaic_0001>

<llo_original>
// kernel: tpu_custom_call.1
$region0: #{tpu_custom_call.1}
  #allocation0 [shape = 'u32[]', space=smem, size = 0x4, offset = 0x4, fixed_abs, tag = 'smem constant byte address 0x4 - core index']
  #allocation1 [shape = 'u32[144,128]{1,0:T(1,128)}', space=vmem, size = 0x12000, scoped, tag = 'internal scratch']
  %s0 = inlined_call_operand.vmem [shape: f32[2,16,3], index: 0, kind: input, shape index: {}]
  %s1 = inlined_call_operand.vmem [shape: f32[2,3,8], index: 1, kind: input, shape index: {}]
  %s2 = inlined_call_operand.vmem [shape: f32[2,4,16], index: 2, kind: input, shape index: {}]
  %s3 = inlined_call_operand.vmem [shape: f32[2,7,8], index: 3, kind: output, shape index: {}]
  %s4 = sld [smem:[#allocation0]]
  $region45: #{tpu_custom_call.1} parent=0
    _
  %s6 = ssub.s32 1, %s4
  %s7 = scalar_select 0, %s6, %s4
  loop: start=0, step=1, limit=4
  $region2: #{tpu_custom_call.1} parent=0 // loop_pre_header
    _
  $region3: #{tpu_custom_call.1} parent=0 // loop_header
    %s9 = sphi 0, %s13
    %p10 = scmp.ge.s32.totalorder %s9, 4
    %s16 = sphi 0, %s28
    %s17 = sphi 0, %s24
    %s18 = sphi 0, %s16
    %s19 = sphi 0, %s17
    %s20 = sphi 0, %s18
    %s21 = sphi 0, %s19
    %s31 = sphi 0, %s33
    %s34 = sphi 0, %s31
    %s35 = sphi 0, %s34
    %s51 = sphi 0, %s35
    %s59 = sphi 0, %s61
    %s62 = sphi 0, %s59
    %s63 = sphi 0, %s62
    %s79 = sphi 0, %s63
    %s85 = sphi 0, %s87
    %s88 = sphi 0, %s85
    %s89 = sphi 0, %s88
    %s105 = sphi 0, %s89
    %s113 = sphi 0, %s115
    %s116 = sphi 0, %s113
    %s117 = sphi 0, %s116
    %s133 = sphi 0, %s117
  $region4: #{tpu_custom_call.1} parent=0 // loop_header_branch
    %12 = sbr.rel (%p10) target = $region8
  $region5: #{tpu_custom_call.1} parent=0 // loop_body
    %s14 = ssub.s32 %s9, 1
    %s15 = ssub.s32 %s9, 2
    %s22 = sadd.s32 1, %s17
    %p23 = scmp.ge.s32.totalorder %s22, 1
    %s24 = scalar_select %p23, 0, %s22
    %s25 = sadd.s32 1, %s16
    %s26 = scalar_select %p23, %s25, %s16
    %p27 = scmp.ge.s32.totalorder %s26, 2
    %s28 = scalar_select %p27, 0, %s26
    %s29 = ssub.s32 %s16, %s28
    %p30 = scmp.eq.s32.totalorder %s29, 0
    %s32 = sadd.s32 %s31, 1
    %s33 = scalar_select %p30, %s31, %s32
    %p36 = pneg %p30
    %p37 = scmp.eq.s32.totalorder %s9, 1
    %p38 = por %p36, %p37
    %p39 = scmp.ne.s32.totalorder %s31, %s34
    %p40 = scmp.eq.s32.totalorder %s9, 0
    %p41 = por %p39, %p40
    %p42 = scmp.ne.s32.totalorder %s31, %s34
    %p43 = scmp.eq.s32.totalorder %s14, 1
    %p44 = por %p42, %p43
    %p45 = scmp.ne.s32.totalorder %s34, %s35
    %p46 = scmp.eq.s32.totalorder %s14, 0
    %p47 = por %p45, %p46
    %p48 = scmp.ne.s32.totalorder %s34, %s35
    %p49 = scmp.eq.s32.totalorder %s15, 1
    %p50 = por %p48, %p49
    %p52 = scmp.ne.s32.totalorder %s35, %s51
    %p53 = scmp.eq.s32.totalorder %s15, 0
    %p54 = por %p52, %p53
    %s55 = ssub.s32 %s16, %s28
    %s56 = ssub.s32 %s17, %s24
    %s57 = sor.u32 %s55, %s56
    %p58 = scmp.eq.s32.totalorder %s57, 0
    %s60 = sadd.s32 %s59, 1
    %s61 = scalar_select %p58, %s59, %s60
    %p64 = pneg %p58
    %p65 = scmp.eq.s32.totalorder %s9, 1
    %p66 = por %p64, %p65
    %p67 = scmp.ne.s32.totalorder %s59, %s62
    %p68 = scmp.eq.s32.totalorder %s9, 0
    %p69 = por %p67, %p68
    %p70 = scmp.ne.s32.totalorder %s59, %s62
    %p71 = scmp.eq.s32.totalorder %s14, 1
    %p72 = por %p70, %p71
    %p73 = scmp.ne.s32.totalorder %s62, %s63
    %p74 = scmp.eq.s32.totalorder %s14, 0
    %p75 = por %p73, %p74
    %p76 = scmp.ne.s32.totalorder %s62, %s63
    %p77 = scmp.eq.s32.totalorder %s15, 1
    %p78 = por %p76, %p77
    %p80 = scmp.ne.s32.totalorder %s63, %s79
    %p81 = scmp.eq.s32.totalorder %s15, 0
    %p82 = por %p80, %p81
    %s83 = ssub.s32 %s16, %s28
    %p84 = scmp.eq.s32.totalorder %s83, 0
    %s86 = sadd.s32 %s85, 1
    %s87 = scalar_select %p84, %s85, %s86
    %p90 = pneg %p84
    %p91 = scmp.eq.s32.totalorder %s9, 1
    %p92 = por %p90, %p91
    %p93 = scmp.ne.s32.totalorder %s85, %s88
    %p94 = scmp.eq.s32.totalorder %s9, 0
    %p95 = por %p93, %p94
    %p96 = scmp.ne.s32.totalorder %s85, %s88
    %p97 = scmp.eq.s32.totalorder %s14, 1
    %p98 = por %p96, %p97
    %p99 = scmp.ne.s32.totalorder %s88, %s89
    %p100 = scmp.eq.s32.totalorder %s14, 0
    %p101 = por %p99, %p100
    %p102 = scmp.ne.s32.totalorder %s88, %s89
    %p103 = scmp.eq.s32.totalorder %s15, 1
    %p104 = por %p102, %p103
    %p106 = scmp.ne.s32.totalorder %s89, %s105
    %p107 = scmp.eq.s32.totalorder %s15, 0
    %p108 = por %p106, %p107
    %s109 = ssub.s32 %s16, %s28
    %s110 = ssub.s32 %s17, %s24
    %s111 = sor.u32 %s109, %s110
    %p112 = scmp.eq.s32.totalorder %s111, 0
    %s114 = sadd.s32 %s113, 1
    %s115 = scalar_select %p112, %s113, %s114
    %p118 = pneg %p112
    %p119 = scmp.eq.s32.totalorder %s9, 1
    %p120 = por %p118, %p119
    %p121 = scmp.ne.s32.totalorder %s113, %s116
    %p122 = scmp.eq.s32.totalorder %s9, 0
    %p123 = por %p121, %p122
    %p124 = scmp.ne.s32.totalorder %s113, %s116
    %p125 = scmp.eq.s32.totalorder %s14, 1
    %p126 = por %p124, %p125
    %p127 = scmp.ne.s32.totalorder %s116, %s117
    %p128 = scmp.eq.s32.totalorder %s14, 0
    %p129 = por %p127, %p128
    %p130 = scmp.ne.s32.totalorder %s116, %s117
    %p131 = scmp.eq.s32.totalorder %s15, 1
    %p132 = por %p130, %p131
    %p134 = scmp.ne.s32.totalorder %s117, %s133
    %p135 = scmp.eq.s32.totalorder %s15, 0
    %p136 = por %p134, %p135
    %p137 = scmp.le.s32.totalorder 1, %s9
    %p138 = scmp.lt.s32.totalorder %s9, 3
    %p139 = pnand %p137, %p138
    %p140 = pneg %p139
    // Predicated region
    $region9: #{tpu_custom_call.1} parent=5 // pred_check
      _
    $region10: #{tpu_custom_call.1} parent=5 // pred_check_branch
      %142 = sbr.rel (%p139) target = $region12
    $region11: #{tpu_custom_call.1} parent=5 // pred_region
      %s143 = ssub.s32 %s9, 1
    $region12: #{tpu_custom_call.1} parent=5 // pred_fallthru
      _
    %p144 = scmp.lt.s32.totalorder %s9, 2
    // Predicated region
    $region13: #{tpu_custom_call.1} parent=5 // pred_check
      %p145 = pneg %p144
    $region14: #{tpu_custom_call.1} parent=5 // pred_check_branch
      %147 = sbr.rel (%p145) target = $region16
    $region15: #{tpu_custom_call.1} parent=5 // pred_region
      // Predicated region
      $region17: #{tpu_custom_call.1} parent=15 // pred_check
        %p148 = pneg %p41
      $region18: #{tpu_custom_call.1} parent=15 // pred_check_branch
        %150 = sbr.rel (%p148) target = $region20
      $region19: #{tpu_custom_call.1} parent=15 // pred_region
        %p151 = scmp.lt.s32.totalorder %s16, 1
        %s152 = scalar_select %p151, %s16, 1
        %s153 = smul.addr %s152, 2
        %s154 = smul.addr %s153, 8
        %s155 = scalar_lea.vmem %s0, %s154
      $region20: #{tpu_custom_call.1} parent=15 // pred_fallthru
        _
      // Predicated region
      $region21: #{tpu_custom_call.1} parent=15 // pred_check
        %p156 = pneg %p69
      $region22: #{tpu_custom_call.1} parent=15 // pred_check_branch
        %158 = sbr.rel (%p156) target = $region24
      $region23: #{tpu_custom_call.1} parent=15 // pred_region
        %p159 = scmp.lt.s32.totalorder %s16, 1
        %s160 = scalar_select %p159, %s16, 1
        %p161 = scmp.lt.s32.totalorder %s17, 0
        %s162 = scalar_select %p161, %s17, 0
        %s163 = sadd.s32 %s162, %s160
        %s164 = smul.addr %s163, 4
        %s165 = scalar_lea.vmem %s1, %s164
      $region24: #{tpu_custom_call.1} parent=15 // pred_fallthru
        _
      // Predicated region
      $region25: #{tpu_custom_call.1} parent=15 // pred_check
        %p166 = pneg %p95
      $region26: #{tpu_custom_call.1} parent=15 // pred_check_branch
        %168 = sbr.rel (%p166) target = $region28
      $region27: #{tpu_custom_call.1} parent=15 // pred_region
        %p169 = scmp.lt.s32.totalorder %s16, 1
        %s170 = scalar_select %p169, %s16, 1
        %s171 = smul.addr %s170, 4
        %s172 = scalar_lea.vmem %s2, %s171
      $region28: #{tpu_custom_call.1} parent=15 // pred_fallthru
        _
    $region16: #{tpu_custom_call.1} parent=5 // pred_fallthru
      _
    %p173 = scmp.le.s32.totalorder 1, %s9
    %p174 = scmp.lt.s32.totalorder %s9, 3
    %p175 = pnand %p173, %p174
    %p176 = pneg %p175
    // Predicated region
    $region29: #{tpu_custom_call.1} parent=5 // pred_check
      _
    $region30: #{tpu_custom_call.1} parent=5 // pred_check_branch
      %178 = sbr.rel (%p175) target = $region32
    $region31: #{tpu_custom_call.1} parent=5 // pred_region
      %s179 = ssub.s32 %s9, 1
      %p180 = scmp.lt.s32.totalorder %s18, 1
      %s181 = scalar_select %p180, %s18, 1
      %s182 = smul.addr %s181, 2
      %s183 = smul.addr %s182, 8
      %s184 = scalar_lea.vmem %s0, %s183
      %p185 = pneg %p47
      %p186 = pneg %p44
      %p187 = scmp.lt.s32.totalorder %s18, 1
      %s188 = scalar_select %p187, %s18, 1
      %p189 = scmp.lt.s32.totalorder %s19, 0
      %s190 = scalar_select %p189, %s19, 0
      %s191 = sadd.s32 %s190, %s188
      %s192 = smul.addr %s191, 4
      %s193 = scalar_lea.vmem %s1, %s192
      %p194 = pneg %p75
      %p195 = pneg %p72
      %p196 = scmp.lt.s32.totalorder %s18, 1
      %s197 = scalar_select %p196, %s18, 1
      %s198 = smul.addr %s197, 4
      %s199 = scalar_lea.vmem %s2, %s198
      %p200 = pneg %p101
      %p201 = pneg %p98
      %p202 = pneg %p129
      %p203 = pneg %p126
      %p204 = scmp.lt.s32.totalorder %s18, 1
      %s205 = scalar_select %p204, %s18, 1
      %p206 = scmp.lt.s32.totalorder %s19, 0
      %s207 = scalar_select %p206, %s19, 0
      %s208 = sadd.s32 %s207, %s205
      %s209 = smul.addr %s208, 8
      %s210 = scalar_lea.vmem %s3, %s209
      %p211 = scmp.lt.s32.totalorder %s18, 1
      %s212 = scalar_select %p211, %s18, 1
      %s213 = smul.addr %s212, 2
      %s214 = smul.addr %s213, 8
      %s215 = scalar_lea.vmem %s0, %s214
      %p216 = scmp.lt.s32.totalorder %s18, 1
      %s217 = scalar_select %p216, %s18, 1
      %p218 = scmp.lt.s32.totalorder %s19, 0
      %s219 = scalar_select %p218, %s19, 0
      %s220 = sadd.s32 %s219, %s217
      %s221 = smul.addr %s220, 4
      %s222 = scalar_lea.vmem %s1, %s221
      %p223 = scmp.lt.s32.totalorder %s18, 1
      %s224 = scalar_select %p223, %s18, 1
      %s225 = smul.addr %s224, 4
      %s226 = scalar_lea.vmem %s2, %s225
      %p227 = scmp.lt.s32.totalorder %s18, 1
      %s228 = scalar_select %p227, %s18, 1
      %p229 = scmp.lt.s32.totalorder %s19, 0
      %s230 = scalar_select %p229, %s19, 0
      %s231 = sadd.s32 %s230, %s228
      %s232 = smul.addr %s231, 8
      %s233 = scalar_lea.vmem %s3, %s232
      %v234 = vld [vmem:[%s215] sm:$0xff]
      %v235 = vld [vmem:[%s215 + $0x8] sm:$0xff]
      %v236 = vld [vmem:[%s222] sm:$0x7]
      %v237 = vld [vmem:[%s226] sm:$0xf]
      %239 = vset.pattern.permute.xlu0 0
      %240 = vperm.xlu0 %239, %v234
      %v241 = vpop.permute.xlu0 %240
      %244 = vset.pattern.permute.xlu0 0
      %245 = vperm.xlu0 %244, %v235
      %v246 = vpop.permute.xlu0 %245
      %v248 = vlaneseq
      %v249 = vshrl.u32 %v248, 7
      %v250 = vsub.s32 0, %v249
      %v251 = vrot.slane %v236, %v250
      %v252 = vsub.f32 %v241, %v251
      %v253 = vsub.f32 %v246, %v251
      %v254 = vmul.f32 %v252, %v252
      %v255 = vmul.f32 %v253, %v253
      %v256 = vadd.f32 %v254, 0.0
      %v257 = vadd.f32 %v255, 0.0
      %258 = vset.pattern.permute.xlu0 1
      %259 = vperm.xlu0 %258, %v234
      %v260 = vpop.permute.xlu0 %259
      %262 = vset.pattern.permute.xlu0 1
      %263 = vperm.xlu0 %262, %v235
      %v264 = vpop.permute.xlu0 %263
      %v266 = vlaneseq
      %v267 = vshrl.u32 %v266, 7
      %v268 = vsub.s32 1, %v267
      %v269 = vrot.slane %v236, %v268
      %v270 = vsub.f32 %v260, %v269
      %v271 = vsub.f32 %v264, %v269
      %v272 = vmul.f32 %v270, %v270
      %v273 = vmul.f32 %v271, %v271
      %v274 = vadd.f32 %v256, %v272
      %v275 = vadd.f32 %v257, %v273
      %276 = vset.pattern.permute.xlu0 2
      %277 = vperm.xlu0 %276, %v234
      %v278 = vpop.permute.xlu0 %277
      %280 = vset.pattern.permute.xlu0 2
      %281 = vperm.xlu0 %280, %v235
      %v282 = vpop.permute.xlu0 %281
      %v284 = vlaneseq
      %v285 = vshrl.u32 %v284, 7
      %v286 = vsub.s32 2, %v285
      %v287 = vrot.slane %v236, %v286
      %v288 = vsub.f32 %v278, %v287
      %v289 = vsub.f32 %v282, %v287
      %v290 = vmul.f32 %v288, %v288
      %v291 = vmul.f32 %v289, %v289
      %v292 = vadd.f32 %v274, %v290
      %v293 = vadd.f32 %v275, %v291
      %v294 = vlaneseq
      %v295 = vshrl.u32 %v294, 7
      %v296 = vadd.s32 %v295, 8
      %vm297 = vcmp.lt.f32.partialorder %v292, 0.16
      %vm298 = vcmp.lt.f32.partialorder %v293, 0.16
      %v299 = vsel %vm297, %v295, 0
      %v300 = vsel %vm298, %v296, 0
      %vm301 = vcmask 64512
      %v302 = vsel %vm301, %v299, 2147483648
      %v303 = vsel %vm301, %v300, 2147483648
      %vm304 = vcmp.gt.s32.totalorder %v302, %v303
      %v305 = vsel %vm304, %v302, %v303
      %v306 = vrot.slane %v305, 4
      %vm307 = vcmp.gt.s32.totalorder %v305, %v306
      %v308 = vsel %vm307, %v305, %v306
      %v309 = vrot.slane %v308, 2
      %vm310 = vcmp.gt.s32.totalorder %v308, %v309
      %v311 = vsel %vm310, %v308, %v309
      %v312 = vrot.slane %v311, 1
      %vm313 = vcmp.gt.s32.totalorder %v311, %v312
      %v314 = vsel %vm313, %v311, %v312
      %vm315 = vcmp.eq.s32.totalorder %v295, %v314
      %vm316 = vcmp.eq.s32.totalorder %v296, %v314
      %v317 = vsel %vm315, 1, 0
      %v318 = vsel %vm316, 1, 0
      %v319 = vcvt.s32.f32 %v317
      %v320 = vcvt.s32.f32 %v318
      %vm321 = vcmask 130048
      %v323 = vsel %vm321, %v237, 0
      %325 = vmatprep.subr.mxu0 0.0
      %326 = vmatpush1.msra.mxu0 %v319
      %327 = vmatprep.subr.mxu0 0.0
      %328 = vmatpush1.msra.mxu0 %v320
      %329 = vmatprep.subr.mxu0 0.0
      %330 = vmatpush1.msra.mxu0 0.0
      %331 = vmatprep.subr.mxu0 0.0
      %332 = vmatpush1.msra.mxu0 0.0
      %333 = vmatprep.subr.mxu0 0.0
      %334 = vmatpush1.msra.mxu0 0.0
      %335 = vmatprep.subr.mxu0 0.0
      %336 = vmatpush1.msra.mxu0 0.0
      %337 = vmatprep.subr.mxu0 0.0
      %338 = vmatpush1.msra.mxu0 0.0
      %339 = vmatprep.subr.mxu0 0.0
      %340 = vmatpush1.msra.mxu0 0.0
      %341 = vmatprep.subr.mxu0 0.0
      %342 = vmatpush1.msra.mxu0 0.0
      %343 = vmatprep.subr.mxu0 0.0
      %344 = vmatpush1.msra.mxu0 0.0
      %345 = vmatprep.subr.mxu0 0.0
      %346 = vmatpush1.msra.mxu0 0.0
      %347 = vmatprep.subr.mxu0 0.0
      %348 = vmatpush1.msra.mxu0 0.0
      %349 = vmatprep.subr.mxu0 0.0
      %350 = vmatpush1.msra.mxu0 0.0
      %351 = vmatprep.subr.mxu0 0.0
      %352 = vmatpush1.msra.mxu0 0.0
      %353 = vmatprep.subr.mxu0 0.0
      %354 = vmatpush1.msra.mxu0 0.0
      %355 = vmatprep.subr.mxu0 0.0
      %356 = vmatpush1.msra.mxu0 0.0
      %357 = vmatprep.subr.mxu0 0.0
      %358 = vmatpush1.msra.mxu0 0.0
      %359 = vmatprep.subr.mxu0 0.0
      %360 = vmatpush1.msra.mxu0 0.0
      %361 = vmatprep.subr.mxu0 0.0
      %362 = vmatpush1.msra.mxu0 0.0
      %363 = vmatprep.subr.mxu0 0.0
      %364 = vmatpush1.msra.mxu0 0.0
      %365 = vmatprep.subr.mxu0 0.0
      %366 = vmatpush1.msra.mxu0 0.0
      %367 = vmatprep.subr.mxu0 0.0
      %368 = vmatpush1.msra.mxu0 0.0
      %369 = vmatprep.subr.mxu0 0.0
      %370 = vmatpush1.msra.mxu0 0.0
      %371 = vmatprep.subr.mxu0 0.0
      %372 = vmatpush1.msra.mxu0 0.0
      %373 = vmatprep.subr.mxu0 0.0
      %374 = vmatpush1.msra.mxu0 0.0
      %375 = vmatprep.subr.mxu0 0.0
      %376 = vmatpush1.msra.mxu0 0.0
      %377 = vmatprep.subr.mxu0 0.0
      %378 = vmatpush1.msra.mxu0 0.0
      %379 = vmatprep.subr.mxu0 0.0
      %380 = vmatpush1.msra.mxu0 0.0
      %381 = vmatprep.subr.mxu0 0.0
      %382 = vmatpush1.msra.mxu0 0.0
      %383 = vmatprep.subr.mxu0 0.0
      %384 = vmatpush1.msra.mxu0 0.0
      %385 = vmatprep.subr.mxu0 0.0
      %386 = vmatpush1.msra.mxu0 0.0
      %387 = vmatprep.subr.mxu0 0.0
      %388 = vmatpush1.msra.mxu0 0.0
      %389 = vmatprep.mubr.f32.mxu0 0.0
      %390 = vmatmul.mubr.f32.gmra.mrb[0].mxu0 %v323
      %v391 = vpop.f32.mrb[0].mxu0
      %v392 = vadd.f32 0.0, %v391
      %v393 = vpop.f32.mrb[0].mxu0
      %394 = vdwg.mxu0
      %v395 = vmul.f32 %v319, %v241
      %v396 = vmul.f32 %v320, %v246
      %v397 = vsel %vm301, %v395, 0.0
      %v398 = vsel %vm301, %v396, 0.0
      %v399 = vadd.f32 %v397, %v398
      %v400 = vrot.slane %v399, 4
      %v401 = vadd.f32 %v399, %v400
      %v402 = vrot.slane %v401, 2
      %v403 = vadd.f32 %v401, %v402
      %v404 = vrot.slane %v403, 1
      %v405 = vadd.f32 %v403, %v404
      %v406 = vmul.f32 %v319, %v260
      %v407 = vmul.f32 %v320, %v264
      %v408 = vsel %vm301, %v406, 0.0
      %v409 = vsel %vm301, %v407, 0.0
      %v410 = vadd.f32 %v408, %v409
      %v411 = vrot.slane %v410, 4
      %v412 = vadd.f32 %v410, %v411
      %v413 = vrot.slane %v412, 2
      %v414 = vadd.f32 %v412, %v413
      %v415 = vrot.slane %v414, 1
      %v416 = vadd.f32 %v414, %v415
      %v417 = vmul.f32 %v319, %v278
      %v418 = vmul.f32 %v320, %v282
      %v419 = vsel %vm301, %v417, 0.0
      %v420 = vsel %vm301, %v418, 0.0
      %v421 = vadd.f32 %v419, %v420
      %v422 = vrot.slane %v421, 4
      %v423 = vadd.f32 %v421, %v422
      %v424 = vrot.slane %v423, 2
      %v425 = vadd.f32 %v423, %v424
      %v426 = vrot.slane %v425, 1
      %v427 = vadd.f32 %v425, %v426
      %vm428 = vcmask 1040384
      %v429 = vsel %vm428, %v405, %v416
      %vm430 = vcmask 1041408
      %v431 = vsel %vm430, %v429, %v427
      %v432 = vsub.f32 %v431, %v236
      %v433 = vrcp.pop 0.4
      %v434 = vmul.f32 %v432, %v433
      %vm435 = vcmask 59392
      %436 = vst.msk [vmem:[%s233] sm:$0x7] %vm435, %v434
      %vm437 = vcmask 60416
      %438 = vst.msk [vmem:[%s233 + $0x3] sm:$0xf] %vm437, %v392
      %p439 = scmp.lt.s32.totalorder %s18, 1
      %s440 = scalar_select %p439, %s18, 1
      %p441 = scmp.lt.s32.totalorder %s19, 0
      %s442 = scalar_select %p441, %s19, 0
      %s443 = sadd.s32 %s442, %s440
      %s444 = smul.addr %s443, 8
      %s445 = scalar_lea.vmem %s3, %s444
      // Predicated region
      $region33: #{tpu_custom_call.1} parent=31 // pred_check
        %p446 = pneg %p126
      $region34: #{tpu_custom_call.1} parent=31 // pred_check_branch
        %448 = sbr.rel (%p446) target = $region36
      $region35: #{tpu_custom_call.1} parent=31 // pred_region
        _
      $region36: #{tpu_custom_call.1} parent=31 // pred_fallthru
        _
    $region32: #{tpu_custom_call.1} parent=5 // pred_fallthru
      _
    %p449 = scmp.le.s32.totalorder 2, %s9
    // Predicated region
    $region37: #{tpu_custom_call.1} parent=5 // pred_check
      %p450 = pneg %p449
    $region38: #{tpu_custom_call.1} parent=5 // pred_check_branch
      %452 = sbr.rel (%p450) target = $region40
    $region39: #{tpu_custom_call.1} parent=5 // pred_region
      %s453 = ssub.s32 %s9, 2
      // Predicated region
      $region41: #{tpu_custom_call.1} parent=39 // pred_check
        %p454 = pneg %p132
      $region42: #{tpu_custom_call.1} parent=39 // pred_check_branch
        %456 = sbr.rel (%p454) target = $region44
      $region43: #{tpu_custom_call.1} parent=39 // pred_region
        %p457 = scmp.lt.s32.totalorder %s20, 1
        %s458 = scalar_select %p457, %s20, 1
        %p459 = scmp.lt.s32.totalorder %s21, 0
        %s460 = scalar_select %p459, %s21, 0
        %s461 = sadd.s32 %s460, %s458
        %s462 = smul.addr %s461, 8
        %s463 = scalar_lea.vmem %s3, %s462
      $region44: #{tpu_custom_call.1} parent=39 // pred_fallthru
        _
    $region40: #{tpu_custom_call.1} parent=5 // pred_fallthru
      _
  $region6: #{tpu_custom_call.1} parent=0 // loop_footer
    %s13 = sadd.s32 1, %s9
  $region7: #{tpu_custom_call.1} parent=0 // loop_footer_branch
    %8 = sbr.rel target = $region3
  $region8: #{tpu_custom_call.1} parent=0 // loop_exit
    _

</llo_original>
